<compile_context>
chip_gen: v7x
topology: tpu7x:2x2x1
jax: 0.10.0
libtpu: 0.0.40
codegen_flags: <defaults>
</compile_context>

<pallas_src>
import functools
import math

import jax
import jax.numpy as jnp
from jax.experimental import pallas as pl
from jax.experimental.pallas import tpu as pltpu


def _bilinear_axis_matrix(in_size: int, out_size: int, scale_factor: float) -> jnp.ndarray:
    """1-D bilinear interpolation matrix (out_size, in_size) matching
    torch.nn.functional.interpolate(mode='bilinear', align_corners=False).

    PyTorch's half-pixel mapping uses 1/scale_factor when scale_factor is
    provided (recompute_scale_factor unset), so we do the same."""
    inv_scale = 1.0 / float(scale_factor)
    i = jnp.arange(out_size, dtype=jnp.float32)
    src = (i + 0.5) * inv_scale - 0.5
    src = jnp.clip(src, 0.0, float(in_size - 1))
    lo = jnp.floor(src)
    frac = src - lo
    lo_i = lo.astype(jnp.int32)
    hi_i = jnp.minimum(lo_i + 1, in_size - 1)
    rows = jnp.arange(out_size)
    a = jnp.zeros((out_size, in_size), jnp.float32)
    a = a.at[rows, lo_i].add(1.0 - frac)
    a = a.at[rows, hi_i].add(frac)
    return a


def _interp_conv_kernel(x_ref, awT_ref, wkr_ref, o_ref, *scratch,
                        w_interp_first: bool):
    # x_ref  : (1, Ci*Hi, Wi)      bf16  VMEM   (one batch element)
    # awT_ref: (Wi, Wo)            bf16  VMEM   (W-axis interp matrix, transposed)
    # wkr_ref: (TILE_R, Ci*Hi)     bf16  VMEM   (row tile of kron(Wconv, Ah))
    # o_ref  : (1, TILE_R, Wo)           VMEM   (row tile of the (Co*Ho, Wo) output)
    if w_interp_first:
        # W-interp once per batch (cached across row tiles), then fused conv+H.
        t_ref, = scratch                                      # (Ci*Hi, Wo) bf16

        @pl.when(pl.program_id(1) == 0)
        def _():
            t_ref[...] = jnp.dot(
                x_ref[0], awT_ref[...],
                preferred_element_type=jnp.float32).astype(t_ref.dtype)

        y = jnp.dot(wkr_ref[...], t_ref[...],
                    preferred_element_type=jnp.float32)       # (TILE_R, Wo) f32
    else:
        # Fused conv+H at input W-resolution, then W-interp (cheaper when Wo > Wi).
        t = jnp.dot(wkr_ref[...], x_ref[0],
                    preferred_element_type=jnp.float32).astype(jnp.bfloat16)
        y = jnp.dot(t, awT_ref[...],
                    preferred_element_type=jnp.float32)       # (TILE_R, Wo) f32
    o_ref[0] = y.astype(o_ref.dtype)


def interpolate_conv(x, conv_weight, scale_factor, mode="bilinear",
                     max_row_tile=512):
    """Forward of InterpolateConv: bilinear upsample (align_corners=False) then
    1x1 conv (no bias).  x: (N, Ci, Hi, Wi); conv_weight: (Co, Ci, 1, 1).
    Returns (N, Co, Ho, Wo)."""
    # TODO(synk): only mode='bilinear' (the module's default) is implemented.
    assert mode == "bilinear"
    n, ci, hi, wi = x.shape
    co = conv_weight.shape[0]
    # PyTorch: output_size = floor(input_size * scale_factor)
    ho = int(math.floor(hi * scale_factor))
    wo = int(math.floor(wi * scale_factor))

    out_dtype = x.dtype if x.dtype in (jnp.float32, jnp.bfloat16) else jnp.float32
    itemsize_out = jnp.dtype(out_dtype).itemsize

    # Separable interpolation matrices (no dense kron(Ah, Aw) resize matrix).
    ah = _bilinear_axis_matrix(hi, ho, scale_factor)                       # (Ho, Hi) f32
    awT = _bilinear_axis_matrix(wi, wo, scale_factor).T.astype(jnp.bfloat16)  # (Wi, Wo)
    w2d = conv_weight.reshape(co, ci).astype(jnp.float32)                  # (Co, Ci)
    # Fuse 1x1 conv + H interpolation into a single matmul operand (f32 kron,
    # single rounding to bf16).  NOTE: inputs/weights run in bf16 on the MXU
    # with f32 accumulation (documented precision vs the f32 PyTorch reference).
    wkr = jnp.kron(w2d, ah).astype(jnp.bfloat16)                           # (Co*Ho, Ci*Hi)

    ki = ci * hi          # contraction size of the fused conv+H matmul
    mo = co * ho          # output rows (Co*Ho)

    # Static ordering choice by FLOPs (upsampling -> kron-first runs the big
    # matmul at Wi instead of Wo).
    flops_w_first = ki * wi * wo + mo * ki * wo
    flops_kron_first = mo * ki * wi + mo * wi * wo
    w_interp_first = flops_w_first < flops_kron_first

    # Output-row tiling (keeps the per-step VMEM working set bounded).
    tile_r = mo
    if mo > max_row_tile:
        for cand in range(max_row_tile, 7, -8):
            if mo % cand == 0:
                tile_r = cand
                break
    n_r = mo // tile_r

    xb = x.astype(jnp.bfloat16).reshape(n, ki, wi)

    grid = (n, n_r)
    in_specs = [
        pl.BlockSpec((1, ki, wi), lambda b, r: (b, 0, 0)),     # x, per-batch
        pl.BlockSpec((wi, wo), lambda b, r: (0, 0)),           # Aw^T, resident
        pl.BlockSpec((tile_r, ki), lambda b, r: (r, 0)),       # kron(W, Ah) row tile
    ]
    out_specs = pl.BlockSpec((1, tile_r, wo), lambda b, r: (b, r, 0))
    scratch_shapes = ([pltpu.VMEM((ki, wo), jnp.bfloat16)]
                      if w_interp_first else [])

    # Explicit VMEM budget: double-buffered tiles + resident weights + scratch.
    per_step = (ki * wi * 2            # x tile (bf16)
                + tile_r * ki * 2      # kron weight tile (bf16)
                + tile_r * wo * itemsize_out  # output tile
                + wi * wo * 2)         # Aw^T
    vmem_bytes = int(min(max(2 * per_step + ki * wo * 2 + (2 << 20), 4 << 20),
                         100 << 20))

    flops = 2 * n * min(flops_w_first, flops_kron_first)
    bytes_accessed = (n * ki * wi * 2 + mo * ki * 2 + wi * wo * 2
                      + n * mo * wo * itemsize_out)

    kernel = functools.partial(_interp_conv_kernel, w_interp_first=w_interp_first)
    out = pl.pallas_call(
        kernel,
        out_shape=jax.ShapeDtypeStruct((n, mo, wo), out_dtype),
        grid_spec=pltpu.PrefetchScalarGridSpec(
            num_scalar_prefetch=0,
            grid=grid,
            in_specs=in_specs,
            out_specs=out_specs,
            scratch_shapes=scratch_shapes),
        compiler_params=pltpu.CompilerParams(
            dimension_semantics=(
                "parallel",
                "arbitrary" if w_interp_first else "parallel"),
            vmem_limit_bytes=vmem_bytes),
        cost_estimate=pl.CostEstimate(
            flops=flops, transcendentals=0, bytes_accessed=bytes_accessed),
    )(xb, awT, wkr)
    # (N, Co*Ho, Wo) -> NCHW view; free reshape at the XLA level.
    return out.reshape(n, co, ho, wo)


if __name__ == "__main__":
    # Module config (synthetic, deterministic): in_planes=4, out_planes=8, scale_factor=2
    N, CI, H, W = 2, 4, 16, 16
    CO = 8
    SCALE = 2

    key = jax.random.PRNGKey(0)
    kx, kw = jax.random.split(key)
    x = jax.random.normal(kx, (N, CI, H, W), dtype=jnp.float32)
    conv_w = jax.random.normal(kw, (CO, CI, 1, 1), dtype=jnp.float32) * 0.1

    out = interpolate_conv(x, conv_w, SCALE, mode="bilinear")
    out = jax.block_until_ready(out)
    assert out.shape == (N, CO, H * SCALE, W * SCALE)

    # Pure-JAX f32 reference: separable bilinear upsample then 1x1 conv.
    ah_f = _bilinear_axis_matrix(H, H * SCALE, SCALE)
    aw_f = _bilinear_axis_matrix(W, W * SCALE, SCALE)
    up_ref = jnp.einsum("Hh,nchw,Ww->ncHW", ah_f, x, aw_f)
    ref = jnp.einsum("oc,nchw->nohw", conv_w.reshape(CO, CI), up_ref)
    err = float(jnp.max(jnp.abs(out - ref)))
    # Kernel uses bf16 MXU operands with f32 accumulation -> allow bf16 slack.
    assert jnp.allclose(out, ref, atol=2e-2, rtol=2e-2), err

    print("KERNEL_OK")
</pallas_src>

<mosaic_0001>
module attributes {stable_mosaic.version = 11 : i64} {
  func.func @_interp_conv_kernel(%arg0: i32, %arg1: i32, %arg2: memref<1x64x16xbf16, #tpu.memory_space<vmem>>, %arg3: memref<16x32xbf16, #tpu.memory_space<vmem>>, %arg4: memref<256x64xbf16, #tpu.memory_space<vmem>>, %arg5: memref<1x256x32xf32, #tpu.memory_space<vmem>>) attributes {dimension_semantics = [#tpu.dimension_semantics<parallel>, #tpu.dimension_semantics<parallel>], iteration_bounds = array<i64: 2, 1>, scalar_prefetch = 0 : i64, scratch_operands = 0 : i64, tpu.core_type = #tpu.core_type<tc>, window_params = [{transform_indices = @transform_0, window_bounds = array<i64: 1, 64, 16>}, {pipeline_mode = #tpu.pipeline_mode<synchronous>, transform_indices = @transform_1, window_bounds = array<i64: 16, 32>}, {transform_indices = @transform_2, window_bounds = array<i64: 256, 64>}, {transform_indices = @transform_3, window_bounds = array<i64: 1, 256, 32>}]} {
    %c0 = arith.constant 0 : index
    %c0_0 = arith.constant 0 : index
    %0 = vector.load %arg4[%c0, %c0_0] : memref<256x64xbf16, #tpu.memory_space<vmem>>, vector<256x64xbf16>
    %c0_1 = arith.constant 0 : index
    %c0_2 = arith.constant 0 : index
    %c0_3 = arith.constant 0 : index
    %1 = vector.load %arg2[%c0_1, %c0_2, %c0_3] : memref<1x64x16xbf16, #tpu.memory_space<vmem>>, vector<1x64x16xbf16>
    %2 = vector.shape_cast %1 : vector<1x64x16xbf16> to vector<64x16xbf16>
    %cst = arith.constant dense<0.000000e+00> : vector<256x16xf32>
    %3 = tpu.matmul %0, %2, %cst {dimension_numbers = #tpu.dot_dimension_numbers<[1], [0], [0], [1], [0, 0, 1, 1], [], []>} : vector<256x64xbf16>, vector<64x16xbf16>, vector<256x16xf32> -> vector<256x16xf32>
    %4 = arith.truncf %3 : vector<256x16xf32> to vector<256x16xbf16>
    %c0_4 = arith.constant 0 : index
    %c0_5 = arith.constant 0 : index
    %5 = vector.load %arg3[%c0_4, %c0_5] : memref<16x32xbf16, #tpu.memory_space<vmem>>, vector<16x32xbf16>
    %cst_6 = arith.constant dense<0.000000e+00> : vector<256x32xf32>
    %6 = tpu.matmul %4, %5, %cst_6 {dimension_numbers = #tpu.dot_dimension_numbers<[1], [0], [0], [1], [0, 0, 1, 1], [], []>} : vector<256x16xbf16>, vector<16x32xbf16>, vector<256x32xf32> -> vector<256x32xf32>
    %c0_7 = arith.constant 0 : index
    %c0_8 = arith.constant 0 : index
    %c0_9 = arith.constant 0 : index
    %7 = vector.load %arg5[%c0_7, %c0_8, %c0_9] : memref<1x256x32xf32, #tpu.memory_space<vmem>>, vector<1x256x32xf32>
    %8 = vector.shape_cast %7 : vector<1x256x32xf32> to vector<256x32xf32>
    %9 = vector.shape_cast %6 : vector<256x32xf32> to vector<1x256x32xf32>
    tpu.vector_store %arg5[%c0_7, %c0_8, %c0_9], %9 {strides = array<i32>} : memref<1x256x32xf32, #tpu.memory_space<vmem>>, vector<1x256x32xf32>,
    return
  }
  func.func @transform_0(%arg0: i32, %arg1: i32) -> (i32, i32, i32) {
    %c0_i32 = arith.constant 0 : i32
    %c0_i32_0 = arith.constant 0 : i32
    %c0_i32_1 = arith.constant 0 : i32
    return %arg0, %c0_i32, %c0_i32_0 : i32, i32, i32
  }
  func.func @transform_1(%arg0: i32, %arg1: i32) -> (i32, i32) {
    %c0_i32 = arith.constant 0 : i32
    %c0_i32_0 = arith.constant 0 : i32
    %c0_i32_1 = arith.constant 0 : i32
    return %c0_i32, %c0_i32_0 : i32, i32
  }
  func.func @transform_2(%arg0: i32, %arg1: i32) -> (i32, i32) {
    %c0_i32 = arith.constant 0 : i32
    %c0_i32_0 = arith.constant 0 : i32
    return %arg1, %c0_i32 : i32, i32
  }
  func.func @transform_3(%arg0: i32, %arg1: i32) -> (i32, i32, i32) {
    %c0_i32 = arith.constant 0 : i32
    %c0_i32_0 = arith.constant 0 : i32
    return %arg0, %arg1, %c0_i32 : i32, i32, i32
  }
}

</mosaic_0001>

<llo_original>
// kernel: tpu_custom_call.1
$region0: #{tpu_custom_call.1}
  #allocation0 [shape = 'u32[]', space=smem, size = 0x4, offset = 0x4, fixed_abs, tag = 'smem constant byte address 0x4 - core index']
  #allocation1 [shape = 'u32[144,128]{1,0:T(1,128)}', space=vmem, size = 0x12000, scoped, tag = 'internal scratch']
  %s0 = inlined_call_operand.vmem [shape: bf16[2,64,16], index: 0, kind: input, shape index: {}]
  %s1 = inlined_call_operand.vmem [shape: bf16[16,32], index: 1, kind: input, shape index: {}]
  %s2 = inlined_call_operand.vmem [shape: bf16[256,64], index: 2, kind: input, shape index: {}]
  %s3 = inlined_call_operand.vmem [shape: f32[2,256,32], index: 3, kind: output, shape index: {}]
  %s4 = sld [smem:[#allocation0]]
  $region45: #{tpu_custom_call.1} parent=0
    _
  %s6 = ssub.s32 1, %s4
  %s7 = scalar_select 0, %s6, %s4
  loop: start=0, step=1, limit=4
  $region2: #{tpu_custom_call.1} parent=0 // loop_pre_header
    _
  $region3: #{tpu_custom_call.1} parent=0 // loop_header
    %s9 = sphi 0, %s13
    %p10 = scmp.ge.s32.totalorder %s9, 4
    %s16 = sphi 0, %s28
    %s17 = sphi 0, %s24
    %s18 = sphi 0, %s16
    %s19 = sphi 0, %s17
    %s20 = sphi 0, %s18
    %s21 = sphi 0, %s19
    %s31 = sphi 0, %s33
    %s34 = sphi 0, %s31
    %s35 = sphi 0, %s34
    %s51 = sphi 0, %s35
    %s55 = sphi 0, %s55
    %s57 = sphi 0, %s55
    %s58 = sphi 0, %s57
    %s72 = sphi 0, %s58
    %s78 = sphi 0, %s80
    %s81 = sphi 0, %s78
    %s82 = sphi 0, %s81
    %s98 = sphi 0, %s82
    %s106 = sphi 0, %s108
    %s109 = sphi 0, %s106
    %s110 = sphi 0, %s109
    %s126 = sphi 0, %s110
  $region4: #{tpu_custom_call.1} parent=0 // loop_header_branch
    %12 = sbr.rel (%p10) target = $region8
  $region5: #{tpu_custom_call.1} parent=0 // loop_body
    %s14 = ssub.s32 %s9, 1
    %s15 = ssub.s32 %s9, 2
    %s22 = sadd.s32 1, %s17
    %p23 = scmp.ge.s32.totalorder %s22, 1
    %s24 = scalar_select %p23, 0, %s22
    %s25 = sadd.s32 1, %s16
    %s26 = scalar_select %p23, %s25, %s16
    %p27 = scmp.ge.s32.totalorder %s26, 2
    %s28 = scalar_select %p27, 0, %s26
    %s29 = ssub.s32 %s16, %s28
    %p30 = scmp.eq.s32.totalorder %s29, 0
    %s32 = sadd.s32 %s31, 1
    %s33 = scalar_select %p30, %s31, %s32
    %p36 = pneg %p30
    %p37 = scmp.eq.s32.totalorder %s9, 1
    %p38 = por %p36, %p37
    %p39 = scmp.ne.s32.totalorder %s31, %s34
    %p40 = scmp.eq.s32.totalorder %s9, 0
    %p41 = por %p39, %p40
    %p42 = scmp.ne.s32.totalorder %s31, %s34
    %p43 = scmp.eq.s32.totalorder %s14, 1
    %p44 = por %p42, %p43
    %p45 = scmp.ne.s32.totalorder %s34, %s35
    %p46 = scmp.eq.s32.totalorder %s14, 0
    %p47 = por %p45, %p46
    %p48 = scmp.ne.s32.totalorder %s34, %s35
    %p49 = scmp.eq.s32.totalorder %s15, 1
    %p50 = por %p48, %p49
    %p52 = scmp.ne.s32.totalorder %s35, %s51
    %p53 = scmp.eq.s32.totalorder %s15, 0
    %p54 = por %p52, %p53
    %s56 = sadd.s32 %s55, 1
    %p59 = scmp.eq.s32.totalorder %s9, 1
    %p60 = scmp.ne.s32.totalorder %s55, %s57
    %p61 = scmp.eq.s32.totalorder %s9, 0
    %p62 = por %p60, %p61
    %p63 = scmp.ne.s32.totalorder %s55, %s57
    %p64 = scmp.eq.s32.totalorder %s14, 1
    %p65 = por %p63, %p64
    %p66 = scmp.ne.s32.totalorder %s57, %s58
    %p67 = scmp.eq.s32.totalorder %s14, 0
    %p68 = por %p66, %p67
    %p69 = scmp.ne.s32.totalorder %s57, %s58
    %p70 = scmp.eq.s32.totalorder %s15, 1
    %p71 = por %p69, %p70
    %p73 = scmp.ne.s32.totalorder %s58, %s72
    %p74 = scmp.eq.s32.totalorder %s15, 0
    %p75 = por %p73, %p74
    %s76 = ssub.s32 %s17, %s24
    %p77 = scmp.eq.s32.totalorder %s76, 0
    %s79 = sadd.s32 %s78, 1
    %s80 = scalar_select %p77, %s78, %s79
    %p83 = pneg %p77
    %p84 = scmp.eq.s32.totalorder %s9, 1
    %p85 = por %p83, %p84
    %p86 = scmp.ne.s32.totalorder %s78, %s81
    %p87 = scmp.eq.s32.totalorder %s9, 0
    %p88 = por %p86, %p87
    %p89 = scmp.ne.s32.totalorder %s78, %s81
    %p90 = scmp.eq.s32.totalorder %s14, 1
    %p91 = por %p89, %p90
    %p92 = scmp.ne.s32.totalorder %s81, %s82
    %p93 = scmp.eq.s32.totalorder %s14, 0
    %p94 = por %p92, %p93
    %p95 = scmp.ne.s32.totalorder %s81, %s82
    %p96 = scmp.eq.s32.totalorder %s15, 1
    %p97 = por %p95, %p96
    %p99 = scmp.ne.s32.totalorder %s82, %s98
    %p100 = scmp.eq.s32.totalorder %s15, 0
    %p101 = por %p99, %p100
    %s102 = ssub.s32 %s16, %s28
    %s103 = ssub.s32 %s17, %s24
    %s104 = sor.u32 %s102, %s103
    %p105 = scmp.eq.s32.totalorder %s104, 0
    %s107 = sadd.s32 %s106, 1
    %s108 = scalar_select %p105, %s106, %s107
    %p111 = pneg %p105
    %p112 = scmp.eq.s32.totalorder %s9, 1
    %p113 = por %p111, %p112
    %p114 = scmp.ne.s32.totalorder %s106, %s109
    %p115 = scmp.eq.s32.totalorder %s9, 0
    %p116 = por %p114, %p115
    %p117 = scmp.ne.s32.totalorder %s106, %s109
    %p118 = scmp.eq.s32.totalorder %s14, 1
    %p119 = por %p117, %p118
    %p120 = scmp.ne.s32.totalorder %s109, %s110
    %p121 = scmp.eq.s32.totalorder %s14, 0
    %p122 = por %p120, %p121
    %p123 = scmp.ne.s32.totalorder %s109, %s110
    %p124 = scmp.eq.s32.totalorder %s15, 1
    %p125 = por %p123, %p124
    %p127 = scmp.ne.s32.totalorder %s110, %s126
    %p128 = scmp.eq.s32.totalorder %s15, 0
    %p129 = por %p127, %p128
    %p130 = scmp.le.s32.totalorder 1, %s9
    %p131 = scmp.lt.s32.totalorder %s9, 3
    %p132 = pnand %p130, %p131
    %p133 = pneg %p132
    // Predicated region
    $region9: #{tpu_custom_call.1} parent=5 // pred_check
      _
    $region10: #{tpu_custom_call.1} parent=5 // pred_check_branch
      %135 = sbr.rel (%p132) target = $region12
    $region11: #{tpu_custom_call.1} parent=5 // pred_region
      %s136 = ssub.s32 %s9, 1
      // Predicated region
      $region13: #{tpu_custom_call.1} parent=11 // pred_check
        %p137 = pneg %p68
      $region14: #{tpu_custom_call.1} parent=11 // pred_check_branch
        %139 = sbr.rel (%p137) target = $region16
      $region15: #{tpu_custom_call.1} parent=11 // pred_region
        _
      $region16: #{tpu_custom_call.1} parent=11 // pred_fallthru
        _
      // Predicated region
      $region17: #{tpu_custom_call.1} parent=11 // pred_check
        %p140 = pneg %p94
      $region18: #{tpu_custom_call.1} parent=11 // pred_check_branch
        %142 = sbr.rel (%p140) target = $region20
      $region19: #{tpu_custom_call.1} parent=11 // pred_region
        %s143 = smul.u32 32, %s19
        %p144 = scmp.lt.s32.totalorder %s143, 31
        %s145 = scalar_select %p144, %s143, 31
        %s146 = smul.addr %s145, 4
        %s147 = scalar_lea.vmem %s2, %s146
        %s148 = smul.u32 32, %s19
      $region20: #{tpu_custom_call.1} parent=11 // pred_fallthru
        _
    $region12: #{tpu_custom_call.1} parent=5 // pred_fallthru
      _
    %p149 = scmp.lt.s32.totalorder %s9, 2
    // Predicated region
    $region21: #{tpu_custom_call.1} parent=5 // pred_check
      %p150 = pneg %p149
    $region22: #{tpu_custom_call.1} parent=5 // pred_check_branch
      %152 = sbr.rel (%p150) target = $region24
    $region23: #{tpu_custom_call.1} parent=5 // pred_region
      // Predicated region
      $region25: #{tpu_custom_call.1} parent=23 // pred_check
        %p153 = pneg %p41
      $region26: #{tpu_custom_call.1} parent=23 // pred_check_branch
        %155 = sbr.rel (%p153) target = $region28
      $region27: #{tpu_custom_call.1} parent=23 // pred_region
        %p156 = scmp.lt.s32.totalorder %s16, 1
        %s157 = scalar_select %p156, %s16, 1
        %s158 = smul.addr %s157, 8
        %s159 = smul.addr %s158, 4
        %s160 = scalar_lea.vmem %s0, %s159
      $region28: #{tpu_custom_call.1} parent=23 // pred_fallthru
        _
    $region24: #{tpu_custom_call.1} parent=5 // pred_fallthru
      _
    %p161 = scmp.le.s32.totalorder 1, %s9
    %p162 = scmp.lt.s32.totalorder %s9, 3
    %p163 = pnand %p161, %p162
    %p164 = pneg %p163
    // Predicated region
    $region29: #{tpu_custom_call.1} parent=5 // pred_check
      _
    $region30: #{tpu_custom_call.1} parent=5 // pred_check_branch
      %166 = sbr.rel (%p163) target = $region32
    $region31: #{tpu_custom_call.1} parent=5 // pred_region
      %s167 = ssub.s32 %s9, 1
      %p168 = scmp.lt.s32.totalorder %s18, 1
      %s169 = scalar_select %p168, %s18, 1
      %s170 = smul.addr %s169, 8
      %s171 = smul.addr %s170, 4
      %s172 = scalar_lea.vmem %s0, %s171
      %p173 = pneg %p47
      %p174 = pneg %p44
      %p175 = pneg %p68
      %p176 = pneg %p65
      %s177 = smul.u32 32, %s19
      %p178 = scmp.lt.s32.totalorder %s177, 31
      %s179 = scalar_select %p178, %s177, 31
      %s180 = smul.addr %s179, 4
      %s181 = scalar_lea.vmem %s2, %s180
      %p182 = pneg %p94
      %p183 = pneg %p91
      %p184 = pneg %p122
      %p185 = pneg %p119
      %s186 = smul.u32 32, %s19
      %p187 = scmp.lt.s32.totalorder %s18, 1
      %s188 = scalar_select %p187, %s18, 1
      %p189 = scmp.lt.s32.totalorder %s186, 31
      %s190 = scalar_select %p189, %s186, 31
      %s191 = smul.addr %s188, 32
      %s192 = sadd.s32 %s190, %s191
      %s193 = smul.addr %s192, 8
      %s194 = scalar_lea.vmem %s3, %s193
      %p195 = scmp.lt.s32.totalorder %s18, 1
      %s196 = scalar_select %p195, %s18, 1
      %s197 = smul.addr %s196, 8
      %s198 = smul.addr %s197, 4
      %s199 = scalar_lea.vmem %s0, %s198
      %s200 = smul.u32 32, %s19
      %p201 = scmp.lt.s32.totalorder %s200, 31
      %s202 = scalar_select %p201, %s200, 31
      %s203 = smul.addr %s202, 4
      %s204 = scalar_lea.vmem %s2, %s203
      %s205 = smul.u32 32, %s19
      %s206 = smul.u32 32, %s19
      %p207 = scmp.lt.s32.totalorder %s18, 1
      %s208 = scalar_select %p207, %s18, 1
      %p209 = scmp.lt.s32.totalorder %s206, 31
      %s210 = scalar_select %p209, %s206, 31
      %s211 = smul.addr %s208, 32
      %s212 = sadd.s32 %s210, %s211
      %s213 = smul.addr %s212, 8
      %s214 = scalar_lea.vmem %s3, %s213
      %s215 = smul.u32 32, %s19
      %v217 = vld [vmem:[%s204] sm:$0xf]
      %v218 = vld [vmem:[%s204 + $0x4] sm:$0xf]
      %v219 = vld [vmem:[%s204 + $0x8] sm:$0xf]
      %v220 = vld [vmem:[%s204 + $0xc] sm:$0xf]
      %v221 = vld [vmem:[%s204 + $0x10] sm:$0xf]
      %v222 = vld [vmem:[%s204 + $0x14] sm:$0xf]
      %v223 = vld [vmem:[%s204 + $0x18] sm:$0xf]
      %v224 = vld [vmem:[%s204 + $0x1c] sm:$0xf]
      %v225 = vld [vmem:[%s204 + $0x20] sm:$0xf]
      %v226 = vld [vmem:[%s204 + $0x24] sm:$0xf]
      %v227 = vld [vmem:[%s204 + $0x28] sm:$0xf]
      %v228 = vld [vmem:[%s204 + $0x2c] sm:$0xf]
      %v229 = vld [vmem:[%s204 + $0x30] sm:$0xf]
      %v230 = vld [vmem:[%s204 + $0x34] sm:$0xf]
      %v231 = vld [vmem:[%s204 + $0x38] sm:$0xf]
      %v232 = vld [vmem:[%s204 + $0x3c] sm:$0xf]
      %v233 = vld [vmem:[%s204 + $0x40] sm:$0xf]
      %v234 = vld [vmem:[%s204 + $0x44] sm:$0xf]
      %v235 = vld [vmem:[%s204 + $0x48] sm:$0xf]
      %v236 = vld [vmem:[%s204 + $0x4c] sm:$0xf]
      %v237 = vld [vmem:[%s204 + $0x50] sm:$0xf]
      %v238 = vld [vmem:[%s204 + $0x54] sm:$0xf]
      %v239 = vld [vmem:[%s204 + $0x58] sm:$0xf]
      %v240 = vld [vmem:[%s204 + $0x5c] sm:$0xf]
      %v241 = vld [vmem:[%s204 + $0x60] sm:$0xf]
      %v242 = vld [vmem:[%s204 + $0x64] sm:$0xf]
      %v243 = vld [vmem:[%s204 + $0x68] sm:$0xf]
      %v244 = vld [vmem:[%s204 + $0x6c] sm:$0xf]
      %v245 = vld [vmem:[%s204 + $0x70] sm:$0xf]
      %v246 = vld [vmem:[%s204 + $0x74] sm:$0xf]
      %v247 = vld [vmem:[%s204 + $0x78] sm:$0xf]
      %v248 = vld [vmem:[%s204 + $0x7c] sm:$0xf]
      %v249 = vld [vmem:[%s199] sm:$0xf]
      %v250 = vld [vmem:[%s199 + $0x4] sm:$0xf]
      %v251 = vld [vmem:[%s199 + $0x8] sm:$0xf]
      %v252 = vld [vmem:[%s199 + $0xc] sm:$0xf]
      %v253 = vld [vmem:[%s199 + $0x10] sm:$0xf]
      %v254 = vld [vmem:[%s199 + $0x14] sm:$0xf]
      %v255 = vld [vmem:[%s199 + $0x18] sm:$0xf]
      %v256 = vld [vmem:[%s199 + $0x1c] sm:$0xf]
      %v289 = vunpack.c.l.b16 %v217
      %v290 = vunpack.c.l.b16 %v218
      %v291 = vunpack.c.l.b16 %v219
      %v292 = vunpack.c.l.b16 %v220
      %v293 = vunpack.c.l.b16 %v221
      %v294 = vunpack.c.l.b16 %v222
      %v295 = vunpack.c.l.b16 %v223
      %v296 = vunpack.c.l.b16 %v224
      %v297 = vunpack.c.l.b16 %v225
      %v298 = vunpack.c.l.b16 %v226
      %v299 = vunpack.c.l.b16 %v227
      %v300 = vunpack.c.l.b16 %v228
      %v301 = vunpack.c.l.b16 %v229
      %v302 = vunpack.c.l.b16 %v230
      %v303 = vunpack.c.l.b16 %v231
      %v304 = vunpack.c.l.b16 %v232
      %v305 = vunpack.c.l.b16 %v233
      %v306 = vunpack.c.l.b16 %v234
      %v307 = vunpack.c.l.b16 %v235
      %v308 = vunpack.c.l.b16 %v236
      %v309 = vunpack.c.l.b16 %v237
      %v310 = vunpack.c.l.b16 %v238
      %v311 = vunpack.c.l.b16 %v239
      %v312 = vunpack.c.l.b16 %v240
      %v313 = vunpack.c.l.b16 %v241
      %v314 = vunpack.c.l.b16 %v242
      %v315 = vunpack.c.l.b16 %v243
      %v316 = vunpack.c.l.b16 %v244
      %v317 = vunpack.c.l.b16 %v245
      %v318 = vunpack.c.l.b16 %v246
      %v319 = vunpack.c.l.b16 %v247
      %v320 = vunpack.c.l.b16 %v248
      %v321 = vpack.c.b16 %v290, %v289
      %v322 = vpack.c.b16 %v292, %v291
      %v323 = vpack.c.b16 %v294, %v293
      %v324 = vpack.c.b16 %v296, %v295
      %v325 = vpack.c.b16 %v298, %v297
      %v326 = vpack.c.b16 %v300, %v299
      %v327 = vpack.c.b16 %v302, %v301
      %v328 = vpack.c.b16 %v304, %v303
      %v329 = vpack.c.b16 %v306, %v305
      %v330 = vpack.c.b16 %v308, %v307
      %v331 = vpack.c.b16 %v310, %v309
      %v332 = vpack.c.b16 %v312, %v311
      %v333 = vpack.c.b16 %v314, %v313
      %v334 = vpack.c.b16 %v316, %v315
      %v335 = vpack.c.b16 %v318, %v317
      %v336 = vpack.c.b16 %v320, %v319
      %v345 = vunpack.c.l.b16 %v249
      %v346 = vunpack.c.l.b16 %v250
      %v347 = vunpack.c.l.b16 %v251
      %v348 = vunpack.c.l.b16 %v252
      %v349 = vunpack.c.l.b16 %v253
      %v350 = vunpack.c.l.b16 %v254
      %v351 = vunpack.c.l.b16 %v255
      %v352 = vunpack.c.l.b16 %v256
      %v353 = vpack.c.b16 %v346, %v345
      %v354 = vpack.c.b16 %v348, %v347
      %v355 = vpack.c.b16 %v350, %v349
      %v356 = vpack.c.b16 %v352, %v351
      %vm361 = vcmask 523264
      %v363 = vsel %vm361, %v321, 0
      %v366 = vsel %vm361, %v322, 0
      %v369 = vsel %vm361, %v323, 0
      %v372 = vsel %vm361, %v324, 0
      %v375 = vsel %vm361, %v325, 0
      %v378 = vsel %vm361, %v326, 0
      %v381 = vsel %vm361, %v327, 0
      %v384 = vsel %vm361, %v328, 0
      %v387 = vsel %vm361, %v329, 0
      %v390 = vsel %vm361, %v330, 0
      %v393 = vsel %vm361, %v331, 0
      %v396 = vsel %vm361, %v332, 0
      %v399 = vsel %vm361, %v333, 0
      %v402 = vsel %vm361, %v334, 0
      %v405 = vsel %vm361, %v335, 0
      %v408 = vsel %vm361, %v336, 0
      %410 = vmatprep.subr.bf16.mxu0 0
      %411 = vmatpush1.bf16.msra.mxu0 %v353
      %412 = vmatprep.subr.bf16.mxu0 0
      %413 = vmatpush1.bf16.msra.mxu0 %v354
      %414 = vmatprep.subr.bf16.mxu0 0
      %415 = vmatpush1.bf16.msra.mxu0 %v355
      %416 = vmatprep.subr.bf16.mxu0 0
      %417 = vmatpush1.bf16.msra.mxu0 %v356
      %418 = vmatprep.subr.bf16.mxu0 0
      %419 = vmatpush1.bf16.msra.mxu0 0
      %420 = vmatprep.subr.bf16.mxu0 0
      %421 = vmatpush1.bf16.msra.mxu0 0
      %422 = vmatprep.subr.bf16.mxu0 0
      %423 = vmatpush1.bf16.msra.mxu0 0
      %424 = vmatprep.subr.bf16.mxu0 0
      %425 = vmatpush1.bf16.msra.mxu0 0
      %426 = vmatprep.subr.bf16.mxu0 0
      %427 = vmatpush1.bf16.msra.mxu0 0
      %428 = vmatprep.subr.bf16.mxu0 0
      %429 = vmatpush1.bf16.msra.mxu0 0
      %430 = vmatprep.subr.bf16.mxu0 0
      %431 = vmatpush1.bf16.msra.mxu0 0
      %432 = vmatprep.subr.bf16.mxu0 0
      %433 = vmatpush1.bf16.msra.mxu0 0
      %434 = vmatprep.subr.bf16.mxu0 0
      %435 = vmatpush1.bf16.msra.mxu0 0
      %436 = vmatprep.subr.bf16.mxu0 0
      %437 = vmatpush1.bf16.msra.mxu0 0
      %438 = vmatprep.subr.bf16.mxu0 0
      %439 = vmatpush1.bf16.msra.mxu0 0
      %440 = vmatprep.subr.bf16.mxu0 0
      %441 = vmatpush1.bf16.msra.mxu0 0
      %442 = vmatprep.mubr.bf16.mxu0 0
      %443 = vmatmul.mubr.bf16.gmra.mrb[0].mxu0 %v363
      %v444 = vpop.f32.mrb[0].mxu0
      %v445 = vadd.f32 0.0, %v444
      %v446 = vpop.f32.mrb[0].mxu0
      %v447 = vpop.f32.mrb[0].mxu0
      %v448 = vadd.f32 0.0, %v447
      %v449 = vpop.f32.mrb[0].mxu0
      %450 = vmatprep.mubr.bf16.mxu0 0
      %451 = vmatmul.mubr.bf16.gmra.mrb[0].mxu0 %v366
      %v452 = vpop.f32.mrb[0].mxu0
      %v453 = vadd.f32 0.0, %v452
      %v454 = vpop.f32.mrb[0].mxu0
      %v455 = vpop.f32.mrb[0].mxu0
      %v456 = vadd.f32 0.0, %v455
      %v457 = vpop.f32.mrb[0].mxu0
      %458 = vmatprep.mubr.bf16.mxu0 0
      %459 = vmatmul.mubr.bf16.gmra.mrb[0].mxu0 %v369
      %v460 = vpop.f32.mrb[0].mxu0
      %v461 = vadd.f32 0.0, %v460
      %v462 = vpop.f32.mrb[0].mxu0
      %v463 = vpop.f32.mrb[0].mxu0
      %v464 = vadd.f32 0.0, %v463
      %v465 = vpop.f32.mrb[0].mxu0
      %466 = vmatprep.mubr.bf16.mxu0 0
      %467 = vmatmul.mubr.bf16.gmra.mrb[0].mxu0 %v372
      %v468 = vpop.f32.mrb[0].mxu0
      %v469 = vadd.f32 0.0, %v468
      %v470 = vpop.f32.mrb[0].mxu0
      %v471 = vpop.f32.mrb[0].mxu0
      %v472 = vadd.f32 0.0, %v471
      %v473 = vpop.f32.mrb[0].mxu0
      %474 = vmatprep.mubr.bf16.mxu0 0
      %475 = vmatmul.mubr.bf16.gmra.mrb[0].mxu0 %v375
      %v476 = vpop.f32.mrb[0].mxu0
      %v477 = vadd.f32 0.0, %v476
      %v478 = vpop.f32.mrb[0].mxu0
      %v479 = vpop.f32.mrb[0].mxu0
      %v480 = vadd.f32 0.0, %v479
      %v481 = vpop.f32.mrb[0].mxu0
      %482 = vmatprep.mubr.bf16.mxu0 0
      %483 = vmatmul.mubr.bf16.gmra.mrb[0].mxu0 %v378
      %v484 = vpop.f32.mrb[0].mxu0
      %v485 = vadd.f32 0.0, %v484
      %v486 = vpop.f32.mrb[0].mxu0
      %v487 = vpop.f32.mrb[0].mxu0
      %v488 = vadd.f32 0.0, %v487
      %v489 = vpop.f32.mrb[0].mxu0
      %490 = vmatprep.mubr.bf16.mxu0 0
      %491 = vmatmul.mubr.bf16.gmra.mrb[0].mxu0 %v381
      %v492 = vpop.f32.mrb[0].mxu0
      %v493 = vadd.f32 0.0, %v492
      %v494 = vpop.f32.mrb[0].mxu0
      %v495 = vpop.f32.mrb[0].mxu0
      %v496 = vadd.f32 0.0, %v495
      %v497 = vpop.f32.mrb[0].mxu0
      %498 = vmatprep.mubr.bf16.mxu0 0
      %499 = vmatmul.mubr.bf16.gmra.mrb[0].mxu0 %v384
      %v500 = vpop.f32.mrb[0].mxu0
      %v501 = vadd.f32 0.0, %v500
      %v502 = vpop.f32.mrb[0].mxu0
      %v503 = vpop.f32.mrb[0].mxu0
      %v504 = vadd.f32 0.0, %v503
      %v505 = vpop.f32.mrb[0].mxu0
      %506 = vmatprep.mubr.bf16.mxu0 0
      %507 = vmatmul.mubr.bf16.gmra.mrb[0].mxu0 %v387
      %v508 = vpop.f32.mrb[0].mxu0
      %v509 = vadd.f32 0.0, %v508
      %v510 = vpop.f32.mrb[0].mxu0
      %v511 = vpop.f32.mrb[0].mxu0
      %v512 = vadd.f32 0.0, %v511
      %v513 = vpop.f32.mrb[0].mxu0
      %514 = vmatprep.mubr.bf16.mxu0 0
      %515 = vmatmul.mubr.bf16.gmra.mrb[0].mxu0 %v390
      %v516 = vpop.f32.mrb[0].mxu0
      %v517 = vadd.f32 0.0, %v516
      %v518 = vpop.f32.mrb[0].mxu0
      %v519 = vpop.f32.mrb[0].mxu0
      %v520 = vadd.f32 0.0, %v519
      %v521 = vpop.f32.mrb[0].mxu0
      %522 = vmatprep.mubr.bf16.mxu0 0
      %523 = vmatmul.mubr.bf16.gmra.mrb[0].mxu0 %v393
      %v524 = vpop.f32.mrb[0].mxu0
      %v525 = vadd.f32 0.0, %v524
      %v526 = vpop.f32.mrb[0].mxu0
      %v527 = vpop.f32.mrb[0].mxu0
      %v528 = vadd.f32 0.0, %v527
      %v529 = vpop.f32.mrb[0].mxu0
      %530 = vmatprep.mubr.bf16.mxu0 0
      %531 = vmatmul.mubr.bf16.gmra.mrb[0].mxu0 %v396
      %v532 = vpop.f32.mrb[0].mxu0
      %v533 = vadd.f32 0.0, %v532
      %v534 = vpop.f32.mrb[0].mxu0
      %v535 = vpop.f32.mrb[0].mxu0
      %v536 = vadd.f32 0.0, %v535
      %v537 = vpop.f32.mrb[0].mxu0
      %538 = vmatprep.mubr.bf16.mxu0 0
      %539 = vmatmul.mubr.bf16.gmra.mrb[0].mxu0 %v399
      %v540 = vpop.f32.mrb[0].mxu0
      %v541 = vadd.f32 0.0, %v540
      %v542 = vpop.f32.mrb[0].mxu0
      %v543 = vpop.f32.mrb[0].mxu0
      %v544 = vadd.f32 0.0, %v543
      %v545 = vpop.f32.mrb[0].mxu0
      %546 = vmatprep.mubr.bf16.mxu0 0
      %547 = vmatmul.mubr.bf16.gmra.mrb[0].mxu0 %v402
      %v548 = vpop.f32.mrb[0].mxu0
      %v549 = vadd.f32 0.0, %v548
      %v550 = vpop.f32.mrb[0].mxu0
      %v551 = vpop.f32.mrb[0].mxu0
      %v552 = vadd.f32 0.0, %v551
      %v553 = vpop.f32.mrb[0].mxu0
      %554 = vmatprep.mubr.bf16.mxu0 0
      %555 = vmatmul.mubr.bf16.gmra.mrb[0].mxu0 %v405
      %v556 = vpop.f32.mrb[0].mxu0
      %v557 = vadd.f32 0.0, %v556
      %v558 = vpop.f32.mrb[0].mxu0
      %v559 = vpop.f32.mrb[0].mxu0
      %v560 = vadd.f32 0.0, %v559
      %v561 = vpop.f32.mrb[0].mxu0
      %562 = vmatprep.mubr.bf16.mxu0 0
      %563 = vmatmul.mubr.bf16.gmra.mrb[0].mxu0 %v408
      %v564 = vpop.f32.mrb[0].mxu0
      %v565 = vadd.f32 0.0, %v564
      %v566 = vpop.f32.mrb[0].mxu0
      %v567 = vpop.f32.mrb[0].mxu0
      %v568 = vadd.f32 0.0, %v567
      %v569 = vpop.f32.mrb[0].mxu0
      %570 = vdwg.mxu0
      %v571 = vpack.c.bf16 %v448, %v445
      %v572 = vpack.c.bf16 %v456, %v453
      %v573 = vpack.c.bf16 %v464, %v461
      %v574 = vpack.c.bf16 %v472, %v469
      %v575 = vpack.c.bf16 %v480, %v477
      %v576 = vpack.c.bf16 %v488, %v485
      %v577 = vpack.c.bf16 %v496, %v493
      %v578 = vpack.c.bf16 %v504, %v501
      %v579 = vpack.c.bf16 %v512, %v509
      %v580 = vpack.c.bf16 %v520, %v517
      %v581 = vpack.c.bf16 %v528, %v525
      %v582 = vpack.c.bf16 %v536, %v533
      %v583 = vpack.c.bf16 %v544, %v541
      %v584 = vpack.c.bf16 %v552, %v549
      %v585 = vpack.c.bf16 %v560, %v557
      %v586 = vpack.c.bf16 %v568, %v565
      %v587 = vld [vmem:[%s1] sm:$0xf]
      %v588 = vld [vmem:[%s1 + $0x4] sm:$0xf]
      %v591 = vunpack.c.l.b16 %v587
      %v592 = vunpack.c.l.b16 %v588
      %v593 = vpack.c.b16 %v592, %v591
      %vm595 = vcmask 130048
      %v597 = vsel %vm595, %v571, 0
      %v600 = vsel %vm595, %v572, 0
      %v603 = vsel %vm595, %v573, 0
      %v606 = vsel %vm595, %v574, 0
      %v609 = vsel %vm595, %v575, 0
      %v612 = vsel %vm595, %v576, 0
      %v615 = vsel %vm595, %v577, 0
      %v618 = vsel %vm595, %v578, 0
      %v621 = vsel %vm595, %v579, 0
      %v624 = vsel %vm595, %v580, 0
      %v627 = vsel %vm595, %v581, 0
      %v630 = vsel %vm595, %v582, 0
      %v633 = vsel %vm595, %v583, 0
      %v636 = vsel %vm595, %v584, 0
      %v639 = vsel %vm595, %v585, 0
      %v642 = vsel %vm595, %v586, 0
      %644 = vmatprep.subr.bf16.mxu0 0
      %645 = vmatpush1.bf16.msra.mxu0 %v593
      %646 = vmatprep.subr.bf16.mxu0 0
      %647 = vmatpush1.bf16.msra.mxu0 0
      %648 = vmatprep.subr.bf16.mxu0 0
      %649 = vmatpush1.bf16.msra.mxu0 0
      %650 = vmatprep.subr.bf16.mxu0 0
      %651 = vmatpush1.bf16.msra.mxu0 0
      %652 = vmatprep.subr.bf16.mxu0 0
      %653 = vmatpush1.bf16.msra.mxu0 0
      %654 = vmatprep.subr.bf16.mxu0 0
      %655 = vmatpush1.bf16.msra.mxu0 0
      %656 = vmatprep.subr.bf16.mxu0 0
      %657 = vmatpush1.bf16.msra.mxu0 0
      %658 = vmatprep.subr.bf16.mxu0 0
      %659 = vmatpush1.bf16.msra.mxu0 0
      %660 = vmatprep.subr.bf16.mxu0 0
      %661 = vmatpush1.bf16.msra.mxu0 0
      %662 = vmatprep.subr.bf16.mxu0 0
      %663 = vmatpush1.bf16.msra.mxu0 0
      %664 = vmatprep.subr.bf16.mxu0 0
      %665 = vmatpush1.bf16.msra.mxu0 0
      %666 = vmatprep.subr.bf16.mxu0 0
      %667 = vmatpush1.bf16.msra.mxu0 0
      %668 = vmatprep.subr.bf16.mxu0 0
      %669 = vmatpush1.bf16.msra.mxu0 0
      %670 = vmatprep.subr.bf16.mxu0 0
      %671 = vmatpush1.bf16.msra.mxu0 0
      %672 = vmatprep.subr.bf16.mxu0 0
      %673 = vmatpush1.bf16.msra.mxu0 0
      %674 = vmatprep.subr.bf16.mxu0 0
      %675 = vmatpush1.bf16.msra.mxu0 0
      %676 = vmatprep.mubr.bf16.mxu0 0
      %677 = vmatmul.mubr.bf16.gmra.mrb[0].mxu0 %v597
      %v678 = vpop.f32.mrb[0].mxu0
      %v679 = vadd.f32 0.0, %v678
      %v680 = vpop.f32.mrb[0].mxu0
      %v681 = vpop.f32.mrb[0].mxu0
      %v682 = vadd.f32 0.0, %v681
      %v683 = vpop.f32.mrb[0].mxu0
      %684 = vmatprep.mubr.bf16.mxu0 0
      %685 = vmatmul.mubr.bf16.gmra.mrb[0].mxu0 %v600
      %v686 = vpop.f32.mrb[0].mxu0
      %v687 = vadd.f32 0.0, %v686
      %v688 = vpop.f32.mrb[0].mxu0
      %v689 = vpop.f32.mrb[0].mxu0
      %v690 = vadd.f32 0.0, %v689
      %v691 = vpop.f32.mrb[0].mxu0
      %692 = vmatprep.mubr.bf16.mxu0 0
      %693 = vmatmul.mubr.bf16.gmra.mrb[0].mxu0 %v603
      %v694 = vpop.f32.mrb[0].mxu0
      %v695 = vadd.f32 0.0, %v694
      %v696 = vpop.f32.mrb[0].mxu0
      %v697 = vpop.f32.mrb[0].mxu0
      %v698 = vadd.f32 0.0, %v697
      %v699 = vpop.f32.mrb[0].mxu0
      %700 = vmatprep.mubr.bf16.mxu0 0
      %701 = vmatmul.mubr.bf16.gmra.mrb[0].mxu0 %v606
      %v702 = vpop.f32.mrb[0].mxu0
      %v703 = vadd.f32 0.0, %v702
      %v704 = vpop.f32.mrb[0].mxu0
      %v705 = vpop.f32.mrb[0].mxu0
      %v706 = vadd.f32 0.0, %v705
      %v707 = vpop.f32.mrb[0].mxu0
      %708 = vmatprep.mubr.bf16.mxu0 0
      %709 = vmatmul.mubr.bf16.gmra.mrb[0].mxu0 %v609
      %v710 = vpop.f32.mrb[0].mxu0
      %v711 = vadd.f32 0.0, %v710
      %v712 = vpop.f32.mrb[0].mxu0
      %v713 = vpop.f32.mrb[0].mxu0
      %v714 = vadd.f32 0.0, %v713
      %v715 = vpop.f32.mrb[0].mxu0
      %716 = vmatprep.mubr.bf16.mxu0 0
      %717 = vmatmul.mubr.bf16.gmra.mrb[0].mxu0 %v612
      %v718 = vpop.f32.mrb[0].mxu0
      %v719 = vadd.f32 0.0, %v718
      %v720 = vpop.f32.mrb[0].mxu0
      %v721 = vpop.f32.mrb[0].mxu0
      %v722 = vadd.f32 0.0, %v721
      %v723 = vpop.f32.mrb[0].mxu0
      %724 = vmatprep.mubr.bf16.mxu0 0
      %725 = vmatmul.mubr.bf16.gmra.mrb[0].mxu0 %v615
      %v726 = vpop.f32.mrb[0].mxu0
      %v727 = vadd.f32 0.0, %v726
      %v728 = vpop.f32.mrb[0].mxu0
      %v729 = vpop.f32.mrb[0].mxu0
      %v730 = vadd.f32 0.0, %v729
      %v731 = vpop.f32.mrb[0].mxu0
      %732 = vmatprep.mubr.bf16.mxu0 0
      %733 = vmatmul.mubr.bf16.gmra.mrb[0].mxu0 %v618
      %v734 = vpop.f32.mrb[0].mxu0
      %v735 = vadd.f32 0.0, %v734
      %v736 = vpop.f32.mrb[0].mxu0
      %v737 = vpop.f32.mrb[0].mxu0
      %v738 = vadd.f32 0.0, %v737
      %v739 = vpop.f32.mrb[0].mxu0
      %740 = vmatprep.mubr.bf16.mxu0 0
      %741 = vmatmul.mubr.bf16.gmra.mrb[0].mxu0 %v621
      %v742 = vpop.f32.mrb[0].mxu0
      %v743 = vadd.f32 0.0, %v742
      %v744 = vpop.f32.mrb[0].mxu0
      %v745 = vpop.f32.mrb[0].mxu0
      %v746 = vadd.f32 0.0, %v745
      %v747 = vpop.f32.mrb[0].mxu0
      %748 = vmatprep.mubr.bf16.mxu0 0
      %749 = vmatmul.mubr.bf16.gmra.mrb[0].mxu0 %v624
      %v750 = vpop.f32.mrb[0].mxu0
      %v751 = vadd.f32 0.0, %v750
      %v752 = vpop.f32.mrb[0].mxu0
      %v753 = vpop.f32.mrb[0].mxu0
      %v754 = vadd.f32 0.0, %v753
      %v755 = vpop.f32.mrb[0].mxu0
      %756 = vmatprep.mubr.bf16.mxu0 0
      %757 = vmatmul.mubr.bf16.gmra.mrb[0].mxu0 %v627
      %v758 = vpop.f32.mrb[0].mxu0
      %v759 = vadd.f32 0.0, %v758
      %v760 = vpop.f32.mrb[0].mxu0
      %v761 = vpop.f32.mrb[0].mxu0
      %v762 = vadd.f32 0.0, %v761
      %v763 = vpop.f32.mrb[0].mxu0
      %764 = vmatprep.mubr.bf16.mxu0 0
      %765 = vmatmul.mubr.bf16.gmra.mrb[0].mxu0 %v630
      %v766 = vpop.f32.mrb[0].mxu0
      %v767 = vadd.f32 0.0, %v766
      %v768 = vpop.f32.mrb[0].mxu0
      %v769 = vpop.f32.mrb[0].mxu0
      %v770 = vadd.f32 0.0, %v769
      %v771 = vpop.f32.mrb[0].mxu0
      %772 = vmatprep.mubr.bf16.mxu0 0
      %773 = vmatmul.mubr.bf16.gmra.mrb[0].mxu0 %v633
      %v774 = vpop.f32.mrb[0].mxu0
      %v775 = vadd.f32 0.0, %v774
      %v776 = vpop.f32.mrb[0].mxu0
      %v777 = vpop.f32.mrb[0].mxu0
      %v778 = vadd.f32 0.0, %v777
      %v779 = vpop.f32.mrb[0].mxu0
      %780 = vmatprep.mubr.bf16.mxu0 0
      %781 = vmatmul.mubr.bf16.gmra.mrb[0].mxu0 %v636
      %v782 = vpop.f32.mrb[0].mxu0
      %v783 = vadd.f32 0.0, %v782
      %v784 = vpop.f32.mrb[0].mxu0
      %v785 = vpop.f32.mrb[0].mxu0
      %v786 = vadd.f32 0.0, %v785
      %v787 = vpop.f32.mrb[0].mxu0
      %788 = vmatprep.mubr.bf16.mxu0 0
      %789 = vmatmul.mubr.bf16.gmra.mrb[0].mxu0 %v639
      %v790 = vpop.f32.mrb[0].mxu0
      %v791 = vadd.f32 0.0, %v790
      %v792 = vpop.f32.mrb[0].mxu0
      %v793 = vpop.f32.mrb[0].mxu0
      %v794 = vadd.f32 0.0, %v793
      %v795 = vpop.f32.mrb[0].mxu0
      %796 = vmatprep.mubr.bf16.mxu0 0
      %797 = vmatmul.mubr.bf16.gmra.mrb[0].mxu0 %v642
      %v798 = vpop.f32.mrb[0].mxu0
      %v799 = vadd.f32 0.0, %v798
      %v800 = vpop.f32.mrb[0].mxu0
      %v801 = vpop.f32.mrb[0].mxu0
      %v802 = vadd.f32 0.0, %v801
      %v803 = vpop.f32.mrb[0].mxu0
      %804 = vdwg.mxu0
      %vm805 = vcmask 261120
      %806 = vst.msk [vmem:[%s214] sm:$0xff] %vm805, %v679
      %807 = vst.msk [vmem:[%s214 + $0x8] sm:$0xff] %vm805, %v682
      %808 = vst.msk [vmem:[%s214 + $0x10] sm:$0xff] %vm805, %v687
      %809 = vst.msk [vmem:[%s214 + $0x18] sm:$0xff] %vm805, %v690
      %810 = vst.msk [vmem:[%s214 + $0x20] sm:$0xff] %vm805, %v695
      %811 = vst.msk [vmem:[%s214 + $0x28] sm:$0xff] %vm805, %v698
      %812 = vst.msk [vmem:[%s214 + $0x30] sm:$0xff] %vm805, %v703
      %813 = vst.msk [vmem:[%s214 + $0x38] sm:$0xff] %vm805, %v706
      %814 = vst.msk [vmem:[%s214 + $0x40] sm:$0xff] %vm805, %v711
      %815 = vst.msk [vmem:[%s214 + $0x48] sm:$0xff] %vm805, %v714
      %816 = vst.msk [vmem:[%s214 + $0x50] sm:$0xff] %vm805, %v719
      %817 = vst.msk [vmem:[%s214 + $0x58] sm:$0xff] %vm805, %v722
      %818 = vst.msk [vmem:[%s214 + $0x60] sm:$0xff] %vm805, %v727
      %819 = vst.msk [vmem:[%s214 + $0x68] sm:$0xff] %vm805, %v730
      %820 = vst.msk [vmem:[%s214 + $0x70] sm:$0xff] %vm805, %v735
      %821 = vst.msk [vmem:[%s214 + $0x78] sm:$0xff] %vm805, %v738
      %822 = vst.msk [vmem:[%s214 + $0x80] sm:$0xff] %vm805, %v743
      %823 = vst.msk [vmem:[%s214 + $0x88] sm:$0xff] %vm805, %v746
      %824 = vst.msk [vmem:[%s214 + $0x90] sm:$0xff] %vm805, %v751
      %825 = vst.msk [vmem:[%s214 + $0x98] sm:$0xff] %vm805, %v754
      %826 = vst.msk [vmem:[%s214 + $0xa0] sm:$0xff] %vm805, %v759
      %827 = vst.msk [vmem:[%s214 + $0xa8] sm:$0xff] %vm805, %v762
      %828 = vst.msk [vmem:[%s214 + $0xb0] sm:$0xff] %vm805, %v767
      %829 = vst.msk [vmem:[%s214 + $0xb8] sm:$0xff] %vm805, %v770
      %830 = vst.msk [vmem:[%s214 + $0xc0] sm:$0xff] %vm805, %v775
      %831 = vst.msk [vmem:[%s214 + $0xc8] sm:$0xff] %vm805, %v778
      %832 = vst.msk [vmem:[%s214 + $0xd0] sm:$0xff] %vm805, %v783
      %833 = vst.msk [vmem:[%s214 + $0xd8] sm:$0xff] %vm805, %v786
      %834 = vst.msk [vmem:[%s214 + $0xe0] sm:$0xff] %vm805, %v791
      %835 = vst.msk [vmem:[%s214 + $0xe8] sm:$0xff] %vm805, %v794
      %836 = vst.msk [vmem:[%s214 + $0xf0] sm:$0xff] %vm805, %v799
      %837 = vst.msk [vmem:[%s214 + $0xf8] sm:$0xff] %vm805, %v802
      %s838 = smul.u32 32, %s19
      %p839 = scmp.lt.s32.totalorder %s18, 1
      %s840 = scalar_select %p839, %s18, 1
      %p841 = scmp.lt.s32.totalorder %s838, 31
      %s842 = scalar_select %p841, %s838, 31
      %s843 = smul.addr %s840, 32
      %s844 = sadd.s32 %s842, %s843
      %s845 = smul.addr %s844, 8
      %s846 = scalar_lea.vmem %s3, %s845
      // Predicated region
      $region33: #{tpu_custom_call.1} parent=31 // pred_check
        %p847 = pneg %p119
      $region34: #{tpu_custom_call.1} parent=31 // pred_check_branch
        %849 = sbr.rel (%p847) target = $region36
      $region35: #{tpu_custom_call.1} parent=31 // pred_region
        %s850 = smul.u32 32, %s19
      $region36: #{tpu_custom_call.1} parent=31 // pred_fallthru
        _
    $region32: #{tpu_custom_call.1} parent=5 // pred_fallthru
      _
    %p851 = scmp.le.s32.totalorder 2, %s9
    // Predicated region
    $region37: #{tpu_custom_call.1} parent=5 // pred_check
      %p852 = pneg %p851
    $region38: #{tpu_custom_call.1} parent=5 // pred_check_branch
      %854 = sbr.rel (%p852) target = $region40
    $region39: #{tpu_custom_call.1} parent=5 // pred_region
      %s855 = ssub.s32 %s9, 2
      // Predicated region
      $region41: #{tpu_custom_call.1} parent=39 // pred_check
        %p856 = pneg %p125
      $region42: #{tpu_custom_call.1} parent=39 // pred_check_branch
        %858 = sbr.rel (%p856) target = $region44
      $region43: #{tpu_custom_call.1} parent=39 // pred_region
        %s859 = smul.u32 32, %s21
        %p860 = scmp.lt.s32.totalorder %s20, 1
        %s861 = scalar_select %p860, %s20, 1
        %p862 = scmp.lt.s32.totalorder %s859, 31
        %s863 = scalar_select %p862, %s859, 31
        %s864 = smul.addr %s861, 32
        %s865 = sadd.s32 %s863, %s864
        %s866 = smul.addr %s865, 8
        %s867 = scalar_lea.vmem %s3, %s866
      $region44: #{tpu_custom_call.1} parent=39 // pred_fallthru
        _
    $region40: #{tpu_custom_call.1} parent=5 // pred_fallthru
      _
  $region6: #{tpu_custom_call.1} parent=0 // loop_footer
    %s13 = sadd.s32 1, %s9
  $region7: #{tpu_custom_call.1} parent=0 // loop_footer_branch
    %8 = sbr.rel target = $region3
  $region8: #{tpu_custom_call.1} parent=0 // loop_exit
    _

</llo_original>
